<compile_context>
chip_gen: v7x
topology: tpu7x:2x2x1
jax: 0.10.0
libtpu: 0.0.40
codegen_flags: <defaults>
</compile_context>

<pallas_src>
import jax
import jax.numpy as jnp
from jax.experimental import pallas as pl
from jax.experimental.pallas import tpu as pltpu


def _round_up(x, m):
    return (x + m - 1) // m * m


def _vmem_budget_bytes():
    """~85% of physical per-core VMEM; conservative 64 MiB (v7x per-TC) if unknown."""
    try:
        cap = pltpu.get_tpu_info().vmem_capacity_bytes
    except Exception:
        cap = 64 * 1024 * 1024
    return int(cap * 0.85)


def _estimate_vmem_bytes(tm, d_pad, dff_chunk, out_itemsize):
    """Rough per-core VMEM footprint of the pipelined kernel."""
    x_bufs = 2 * tm * d_pad * 4                  # f32 row tile, double-buffered
    o_bufs = 2 * tm * d_pad * out_itemsize       # output tile, double-buffered
    w1_bufs = 2 * d_pad * dff_chunk * 2          # bf16 W1 chunk, double-buffered
    w2_bufs = 2 * dff_chunk * d_pad * 2          # bf16 W2 chunk, double-buffered
    b_bufs = 2 * 8 * (dff_chunk + d_pad) * 4     # biases (sublane-padded f32)
    acc = tm * d_pad * 4                         # f32 accumulator scratch
    h = tm * dff_chunk * 4                       # in-kernel hidden chunk (compiler temp)
    return x_bufs + o_bufs + w1_bufs + w2_bufs + b_bufs + acc + h


def _pick_dff_chunk(dff_pad, target, lane_multiple):
    """Largest divisor of dff_pad that is a multiple of lane_multiple and <= target."""
    best = lane_multiple
    c = lane_multiple
    while c <= dff_pad:
        if dff_pad % c == 0 and c <= target:
            best = c
        c += lane_multiple
    return best


def _ffn_kernel(x_ref, w1_ref, b1_ref, w2_ref, b2_ref, o_ref, acc_ref):
    # x_ref:  (TM, Dp)    f32 row tile (same block across k -> fetched once per row tile)
    # w1_ref: (Dp, TKF)   bf16 chunk of W1 (double-buffered across k)
    # b1_ref: (1, TKF)    f32 chunk of b1
    # w2_ref: (TKF, Dp)   bf16 chunk of W2 (double-buffered across k)
    # b2_ref: (1, Dp)     f32
    # o_ref:  (TM, Dp)    output tile (written only at the last k)
    # acc_ref:(TM, Dp)    f32 accumulator scratch
    k = pl.program_id(1)

    @pl.when(k == 0)
    def _init():
        acc_ref[...] = jnp.zeros_like(acc_ref)

    # f32 -> bf16 cast on the VPU inside the kernel (free filler under MXU-bound
    # regime); avoids a separate wrapper-side XLA cast pass over the activations.
    x = x_ref[...].astype(w1_ref.dtype)

    # First matmul on the MXU (bf16 operands, f32 accumulation) over one DFF chunk.
    h = jnp.dot(x, w1_ref[...], preferred_element_type=jnp.float32)
    h = jnp.maximum(h + b1_ref[...], 0.0)            # bias + ReLU on the VPU, f32

    # Second matmul on the same chunk; accumulate partial output in f32.
    acc_ref[...] += jnp.dot(h.astype(w2_ref.dtype), w2_ref[...],
                            preferred_element_type=jnp.float32)

    @pl.when(k == pl.num_programs(1) - 1)
    def _finalize():
        o_ref[...] = (acc_ref[...] + b2_ref[...]).astype(o_ref.dtype)


def prepare_ffn_params(w1, b1, w2, b2, *, lane_multiple=256,
                       compute_dtype=jnp.bfloat16):
    """Pad + cast weights ONCE (hoisted out of the per-step forward path).

    w1: (D, DFF) == torch w_1.weight.T ;  b1: (DFF,)
    w2: (DFF, D) == torch w_2.weight.T ;  b2: (D,)
    lane_multiple: 256 for v6e/v7x (2x256^2 MXU), 128 is native on v5e.
    """
    D, DFF = w1.shape
    D_pad = _round_up(D, lane_multiple)
    DFF_pad = _round_up(DFF, lane_multiple)
    w1p = jnp.pad(w1, ((0, D_pad - D), (0, DFF_pad - DFF))).astype(compute_dtype)
    w2p = jnp.pad(w2, ((0, DFF_pad - DFF), (0, D_pad - D))).astype(compute_dtype)
    b1p = jnp.pad(b1, (0, DFF_pad - DFF)).astype(jnp.float32).reshape(1, DFF_pad)
    b2p = jnp.pad(b2, (0, D_pad - D)).astype(jnp.float32).reshape(1, D_pad)
    return w1p, b1p, w2p, b2p


def positionwise_ffn(x, w1p, b1p, w2p, b2p, *, tm=512, dff_chunk_target=2048,
                     lane_multiple=256, out_dtype=None):
    """
    x:   (B, S, D) float32 (cast to bf16 inside the kernel)
    w1p/b1p/w2p/b2p: pre-padded / pre-cast params from prepare_ffn_params
    out_dtype: defaults to x.dtype (f32 parity); pass jnp.bfloat16 to halve writeback.
    returns (B, S, D) out_dtype
    """
    B, S, D = x.shape
    D_pad, DFF_pad = w1p.shape
    N = B * S
    out_dtype = x.dtype if out_dtype is None else out_dtype
    out_itemsize = jnp.dtype(out_dtype).itemsize

    # ---- Tile sizing --------------------------------------------------------
    # Row tile: multiple of 16 (bf16 packs 16 rows per vreg); clamp for tiny N.
    tm_eff = min(tm, _round_up(N, 16))
    # DFF reduction chunk: divisor of DFF_pad, multiple of lane_multiple.
    tkf_eff = _pick_dff_chunk(DFF_pad, dff_chunk_target, lane_multiple)

    # Shrink chunk (then row tile) until the pipelined footprint fits the budget.
    budget = _vmem_budget_bytes()
    while _estimate_vmem_bytes(tm_eff, D_pad, tkf_eff, out_itemsize) > budget:
        if tkf_eff > lane_multiple:
            tkf_eff = _pick_dff_chunk(DFF_pad, tkf_eff // 2, lane_multiple)
        elif tm_eff > 128:
            tm_eff = max(128, _round_up(tm_eff // 2, 16))
        else:
            break                              # smallest config; let the compiler cope

    N_pad = _round_up(N, tm_eff)
    # Feed both TensorCores on v7x: ensure >= 2 row tiles when cheaply possible.
    if N_pad // tm_eff < 2 and tm_eff % 32 == 0:
        tm_eff //= 2

    num_row_tiles = N_pad // tm_eff
    num_k = DFF_pad // tkf_eff

    # ---- Inputs: x stays f32; no wrapper-side cast pass over activations ----
    x2 = x.reshape(N, D)
    if N_pad != N or D_pad != D:
        x2 = jnp.pad(x2, ((0, N_pad - N), (0, D_pad - D)))

    est = _estimate_vmem_bytes(tm_eff, D_pad, tkf_eff, out_itemsize)
    vmem_limit = int(min(budget, max(int(est * 1.4), 32 * 1024 * 1024)))

    flops = 4 * N_pad * D_pad * DFF_pad            # two matmuls, 2*M*K*N each
    bytes_accessed = (x2.size * x2.dtype.itemsize
                      + w1p.size * w1p.dtype.itemsize
                      + w2p.size * w2p.dtype.itemsize
                      + b1p.size * b1p.dtype.itemsize
                      + b2p.size * b2p.dtype.itemsize
                      + N_pad * D_pad * out_itemsize)

    out = pl.pallas_call(
        _ffn_kernel,
        out_shape=jax.ShapeDtypeStruct((N_pad, D_pad), out_dtype),
        grid_spec=pltpu.PrefetchScalarGridSpec(
            num_scalar_prefetch=0,
            grid=(num_row_tiles, num_k),
            in_specs=[
                # x row tile (f32): same block across k -> DMA'd once per row tile.
                pl.BlockSpec((tm_eff, D_pad), lambda i, k: (i, 0)),
                # Weight / bias chunks: double-buffered across k so weight DMA
                # overlaps MXU work instead of an exposed whole-weight load.
                pl.BlockSpec((D_pad, tkf_eff), lambda i, k: (0, k)),
                pl.BlockSpec((1, tkf_eff), lambda i, k: (0, k)),
                pl.BlockSpec((tkf_eff, D_pad), lambda i, k: (k, 0)),
                pl.BlockSpec((1, D_pad), lambda i, k: (0, 0)),
            ],
            out_specs=pl.BlockSpec((tm_eff, D_pad), lambda i, k: (i, 0)),
            scratch_shapes=[pltpu.VMEM((tm_eff, D_pad), jnp.float32)],
        ),
        compiler_params=pltpu.CompilerParams(
            # Row tiles shard across TensorCores; DFF chunk axis is a reduction.
            dimension_semantics=("parallel", "arbitrary"),
            vmem_limit_bytes=vmem_limit,
        ),
        cost_estimate=pl.CostEstimate(
            flops=flops, transcendentals=0, bytes_accessed=bytes_accessed),
    )(x2, w1p, b1p, w2p, b2p)

    return out[:N, :D].reshape(B, S, D)


if __name__ == "__main__":
    # Shapes consistent with the module: d_model=32, argument=2 -> d_ff=64
    B, S, D = 2, 8, 32
    ARG = 2
    DFF = D * ARG

    key = jax.random.PRNGKey(0)
    kx, k1, kb1, k2, kb2 = jax.random.split(key, 5)

    x = jax.random.normal(kx, (B, S, D), dtype=jnp.float32)

    # Deterministic params (mimics nn.Linear uniform(-1/sqrt(fan_in), 1/sqrt(fan_in)))
    lim1 = 1.0 / (D ** 0.5)
    lim2 = 1.0 / (DFF ** 0.5)
    w1 = jax.random.uniform(k1, (D, DFF), jnp.float32, -lim1, lim1)   # = torch w_1.weight.T
    b1 = jax.random.uniform(kb1, (DFF,), jnp.float32, -lim1, lim1)
    w2 = jax.random.uniform(k2, (DFF, D), jnp.float32, -lim2, lim2)   # = torch w_2.weight.T
    b2 = jax.random.uniform(kb2, (D,), jnp.float32, -lim2, lim2)

    # Weight pad + bf16 cast hoisted out of the forward path (done once).
    params = prepare_ffn_params(w1, b1, w2, b2)

    fwd = jax.jit(positionwise_ffn)
    y = jax.block_until_ready(fwd(x, *params))

    # Pure-JAX f32 reference; bf16 MXU operands (f32 accumulation) => looser tolerance.
    ref = jnp.maximum(x @ w1 + b1, 0.0) @ w2 + b2
    assert y.shape == (B, S, D)
    assert jnp.allclose(y, ref, atol=5e-2, rtol=5e-2), "mismatch vs reference"

    print("KERNEL_OK")
</pallas_src>

<mosaic_0001>
module attributes {stable_mosaic.version = 11 : i64} {
  func.func @_ffn_kernel(%arg0: i32, %arg1: i32, %arg2: memref<16x256xf32, #tpu.memory_space<vmem>>, %arg3: memref<256x256xbf16, #tpu.memory_space<vmem>>, %arg4: memref<1x256xf32, #tpu.memory_space<vmem>>, %arg5: memref<256x256xbf16, #tpu.memory_space<vmem>>, %arg6: memref<1x256xf32, #tpu.memory_space<vmem>>, %arg7: memref<16x256xf32, #tpu.memory_space<vmem>>, %arg8: memref<16x256xf32, #tpu.memory_space<vmem>>) attributes {dimension_semantics = [#tpu.dimension_semantics<parallel>, #tpu.dimension_semantics<arbitrary>], iteration_bounds = array<i64: 1, 1>, scalar_prefetch = 0 : i64, scratch_operands = 1 : i64, tpu.core_type = #tpu.core_type<tc>, window_params = [{transform_indices = @transform_0, window_bounds = array<i64: 16, 256>}, {transform_indices = @transform_1, window_bounds = array<i64: 256, 256>}, {transform_indices = @transform_2, window_bounds = array<i64: 1, 256>}, {transform_indices = @transform_3, window_bounds = array<i64: 256, 256>}, {pipeline_mode = #tpu.pipeline_mode<synchronous>, transform_indices = @transform_4, window_bounds = array<i64: 1, 256>}, {transform_indices = @transform_5, window_bounds = array<i64: 16, 256>}]} {
    %c0_i32 = arith.constant 0 : i32
    %0 = arith.cmpi eq, %arg1, %c0_i32 : i32
    %1 = arith.extui %0 : i1 to i32
    %c0_i32_0 = arith.constant 0 : i32
    %2 = arith.cmpi ne, %1, %c0_i32_0 : i32
    scf.if %2 {
      %cst_16 = arith.constant 0.000000e+00 : f32
      %21 = vector.broadcast %cst_16 : f32 to vector<16x256xf32>
      %c0_17 = arith.constant 0 : index
      %c0_18 = arith.constant 0 : index
      %22 = vector.load %arg8[%c0_17, %c0_18] : memref<16x256xf32, #tpu.memory_space<vmem>>, vector<16x256xf32>
      tpu.vector_store %arg8[%c0_17, %c0_18], %21 {strides = array<i32>} : memref<16x256xf32, #tpu.memory_space<vmem>>, vector<16x256xf32>,
    } else {
    }
    %c0 = arith.constant 0 : index
    %c0_1 = arith.constant 0 : index
    %3 = vector.load %arg2[%c0, %c0_1] : memref<16x256xf32, #tpu.memory_space<vmem>>, vector<16x256xf32>
    %4 = arith.truncf %3 : vector<16x256xf32> to vector<16x256xbf16>
    %c0_2 = arith.constant 0 : index
    %c0_3 = arith.constant 0 : index
    %5 = vector.load %arg3[%c0_2, %c0_3] : memref<256x256xbf16, #tpu.memory_space<vmem>>, vector<256x256xbf16>
    %cst = arith.constant dense<0.000000e+00> : vector<16x256xf32>
    %6 = tpu.matmul %4, %5, %cst {dimension_numbers = #tpu.dot_dimension_numbers<[1], [0], [0], [1], [0, 0, 1, 1], [], []>} : vector<16x256xbf16>, vector<256x256xbf16>, vector<16x256xf32> -> vector<16x256xf32>
    %c0_4 = arith.constant 0 : index
    %c0_5 = arith.constant 0 : index
    %7 = vector.load %arg4[%c0_4, %c0_5] : memref<1x256xf32, #tpu.memory_space<vmem>>, vector<1x256xf32>
    %8 = vector.broadcast %7 : vector<1x256xf32> to vector<16x256xf32>
    %9 = arith.addf %6, %8 : vector<16x256xf32>
    %cst_6 = arith.constant 0.000000e+00 : f32
    %10 = vector.broadcast %cst_6 : f32 to vector<16x256xf32>
    %11 = arith.maximumf %9, %10 : vector<16x256xf32>
    %c0_7 = arith.constant 0 : index
    %c0_8 = arith.constant 0 : index
    %12 = vector.load %arg8[%c0_7, %c0_8] : memref<16x256xf32, #tpu.memory_space<vmem>>, vector<16x256xf32>
    %13 = arith.truncf %11 : vector<16x256xf32> to vector<16x256xbf16>
    %c0_9 = arith.constant 0 : index
    %c0_10 = arith.constant 0 : index
    %14 = vector.load %arg5[%c0_9, %c0_10] : memref<256x256xbf16, #tpu.memory_space<vmem>>, vector<256x256xbf16>
    %cst_11 = arith.constant dense<0.000000e+00> : vector<16x256xf32>
    %15 = tpu.matmul %13, %14, %cst_11 {dimension_numbers = #tpu.dot_dimension_numbers<[1], [0], [0], [1], [0, 0, 1, 1], [], []>} : vector<16x256xbf16>, vector<256x256xbf16>, vector<16x256xf32> -> vector<16x256xf32>
    %16 = arith.addf %12, %15 : vector<16x256xf32>
    %c0_12 = arith.constant 0 : index
    %c0_13 = arith.constant 0 : index
    %17 = vector.load %arg8[%c0_12, %c0_13] : memref<16x256xf32, #tpu.memory_space<vmem>>, vector<16x256xf32>
    tpu.vector_store %arg8[%c0_12, %c0_13], %16 {strides = array<i32>} : memref<16x256xf32, #tpu.memory_space<vmem>>, vector<16x256xf32>,
    %c0_i32_14 = arith.constant 0 : i32
    %18 = arith.cmpi eq, %arg1, %c0_i32_14 : i32
    %19 = arith.extui %18 : i1 to i32
    %c0_i32_15 = arith.constant 0 : i32
    %20 = arith.cmpi ne, %19, %c0_i32_15 : i32
    scf.if %20 {
      %c0_16 = arith.constant 0 : index
      %c0_17 = arith.constant 0 : index
      %21 = vector.load %arg8[%c0_16, %c0_17] : memref<16x256xf32, #tpu.memory_space<vmem>>, vector<16x256xf32>
      %c0_18 = arith.constant 0 : index
      %c0_19 = arith.constant 0 : index
      %22 = vector.load %arg6[%c0_18, %c0_19] : memref<1x256xf32, #tpu.memory_space<vmem>>, vector<1x256xf32>
      %23 = vector.broadcast %22 : vector<1x256xf32> to vector<16x256xf32>
      %24 = arith.addf %21, %23 : vector<16x256xf32>
      %c0_20 = arith.constant 0 : index
      %c0_21 = arith.constant 0 : index
      %25 = vector.load %arg7[%c0_20, %c0_21] : memref<16x256xf32, #tpu.memory_space<vmem>>, vector<16x256xf32>
      tpu.vector_store %arg7[%c0_20, %c0_21], %24 {strides = array<i32>} : memref<16x256xf32, #tpu.memory_space<vmem>>, vector<16x256xf32>,
    } else {
    }
    return
  }
  func.func @transform_0(%arg0: i32, %arg1: i32) -> (i32, i32) {
    %c0_i32 = arith.constant 0 : i32
    %c0_i32_0 = arith.constant 0 : i32
    return %arg0, %c0_i32 : i32, i32
  }
  func.func @transform_1(%arg0: i32, %arg1: i32) -> (i32, i32) {
    %c0_i32 = arith.constant 0 : i32
    %c0_i32_0 = arith.constant 0 : i32
    return %c0_i32, %arg1 : i32, i32
  }
  func.func @transform_2(%arg0: i32, %arg1: i32) -> (i32, i32) {
    %c0_i32 = arith.constant 0 : i32
    %c0_i32_0 = arith.constant 0 : i32
    return %c0_i32, %arg1 : i32, i32
  }
  func.func @transform_3(%arg0: i32, %arg1: i32) -> (i32, i32) {
    %c0_i32 = arith.constant 0 : i32
    %c0_i32_0 = arith.constant 0 : i32
    return %arg1, %c0_i32 : i32, i32
  }
  func.func @transform_4(%arg0: i32, %arg1: i32) -> (i32, i32) {
    %c0_i32 = arith.constant 0 : i32
    %c0_i32_0 = arith.constant 0 : i32
    %c0_i32_1 = arith.constant 0 : i32
    return %c0_i32, %c0_i32_0 : i32, i32
  }
  func.func @transform_5(%arg0: i32, %arg1: i32) -> (i32, i32) {
    %c0_i32 = arith.constant 0 : i32
    %c0_i32_0 = arith.constant 0 : i32
    return %arg0, %c0_i32 : i32, i32
  }
}

</mosaic_0001>

<llo_original>
// kernel: positionwise_ffn.1
$region0: #{positionwise_ffn.1}
  #allocation0 [shape = 'u32[]', space=smem, size = 0x4, offset = 0x4, fixed_abs, tag = 'smem constant byte address 0x4 - core index']
  #allocation1 [shape = 'u32[144,128]{1,0:T(1,128)}', space=vmem, size = 0x12000, scoped, tag = 'internal scratch']
  #allocation2 [shape = 'f32[16,256]{1,0:T(8,128)}', space=vmem, size = 0x4000, scoped, tag = 'scratch operand']
  %s0 = inlined_call_operand.vmem [shape: f32[16,256], index: 0, kind: input, shape index: {}]
  %s1 = inlined_call_operand.hbm [shape: bf16[256,256], index: 1, kind: input, shape index: {}]
  %s2 = inlined_call_operand.vmem [shape: f32[1,256], index: 2, kind: input, shape index: {}]
  %s3 = inlined_call_operand.hbm [shape: bf16[256,256], index: 3, kind: input, shape index: {}]
  %s4 = inlined_call_operand.vmem [shape: f32[1,256], index: 4, kind: input, shape index: {}]
  %s5 = inlined_call_operand.vmem [shape: f32[16,256], index: 5, kind: output, shape index: {}]
  %s6 = sld [smem:[#allocation0]]
  $region46: #{positionwise_ffn.1} parent=0
    _
  %s8 = ssub.s32 1, %s6
  %s9 = scalar_select 0, %s8, %s6
  $region1: #{positionwise_ffn.1} parent=0
    #allocation3 [shape = 'u8[131072]{0}', space=vmem, size = 0x20000, scoped, tag = 'input window, operand 1, single buffered']
    #allocation4 [shape = 's32[1]{0}', space=sflag, size = 0x4, scoped, tag = 'scoped memory for positionwise_ffn.1']
    #allocation5 [shape = 'u8[131072]{0}', space=vmem, size = 0x20000, scoped, tag = 'input window, operand 3, single buffered']
    #allocation6 [shape = 's32[1]{0}', space=sflag, size = 0x4, scoped, tag = 'scoped memory for positionwise_ffn.1']
    %10 = vsyncpa [#allocation4], 0
    %11 = vsyncpa [#allocation6], 0
    // Predicated region
    $region2: #{positionwise_ffn.1} parent=1 // pred_check
      _
    $region3: #{positionwise_ffn.1} parent=1 // pred_check_branch
      %13 = sbr.rel (0) target = $region5
    $region4: #{positionwise_ffn.1} parent=1 // pred_region
      _
    $region5: #{positionwise_ffn.1} parent=1 // pred_fallthru
      _
    // Predicated region
    $region6: #{positionwise_ffn.1} parent=1 // pred_check
      _
    $region7: #{positionwise_ffn.1} parent=1 // pred_check_branch
      %15 = sbr.rel (0) target = $region9
    $region8: #{positionwise_ffn.1} parent=1 // pred_region
      %s17 = ssub.s32 4096, 4096
      %18 = vsyncadd [#allocation4], %s17
      %s19 = sshll.u32 [#allocation3], 4
      %s20 = int_to_ptr.vmem [resolvable:$true] %s19
      %25 = dma.hbm_to_vmem [thread:$0]  %s1, 4096, %s20, [#allocation4], 128, 128, 8
    $region9: #{positionwise_ffn.1} parent=1 // pred_fallthru
      _
    // Predicated region
    $region10: #{positionwise_ffn.1} parent=1 // pred_check
      _
    $region11: #{positionwise_ffn.1} parent=1 // pred_check_branch
      %27 = sbr.rel (0) target = $region13
    $region12: #{positionwise_ffn.1} parent=1 // pred_region
      _
    $region13: #{positionwise_ffn.1} parent=1 // pred_fallthru
      _
    // Predicated region
    $region14: #{positionwise_ffn.1} parent=1 // pred_check
      _
    $region15: #{positionwise_ffn.1} parent=1 // pred_check_branch
      %29 = sbr.rel (0) target = $region17
    $region16: #{positionwise_ffn.1} parent=1 // pred_region
      %s31 = ssub.s32 4096, 4096
      %32 = vsyncadd [#allocation6], %s31
      %s33 = sshll.u32 [#allocation5], 4
      %s34 = int_to_ptr.vmem [resolvable:$true] %s33
      %39 = dma.hbm_to_vmem [thread:$0]  %s3, 4096, %s34, [#allocation6], 128, 128, 8
    $region17: #{positionwise_ffn.1} parent=1 // pred_fallthru
      _
    // Predicated region
    $region18: #{positionwise_ffn.1} parent=1 // pred_check
      _
    $region19: #{positionwise_ffn.1} parent=1 // pred_check_branch
      %41 = sbr.rel (0) target = $region21
    $region20: #{positionwise_ffn.1} parent=1 // pred_region
      _
    $region21: #{positionwise_ffn.1} parent=1 // pred_fallthru
      _
    // Predicated region
    $region22: #{positionwise_ffn.1} parent=1 // pred_check
      _
    $region23: #{positionwise_ffn.1} parent=1 // pred_check_branch
      %43 = sbr.rel (0) target = $region25
    $region24: #{positionwise_ffn.1} parent=1 // pred_region
      %44 = dma.done [#allocation4], 4096
    $region25: #{positionwise_ffn.1} parent=1 // pred_fallthru
      _
    // Predicated region
    $region26: #{positionwise_ffn.1} parent=1 // pred_check
      _
    $region27: #{positionwise_ffn.1} parent=1 // pred_check_branch
      %46 = sbr.rel (0) target = $region29
    $region28: #{positionwise_ffn.1} parent=1 // pred_region
      %47 = dma.done [#allocation6], 4096
    $region29: #{positionwise_ffn.1} parent=1 // pred_fallthru
      _
    %p48 = scmp.eq.s32.totalorder 0, 0
    // Predicated region
    $region30: #{positionwise_ffn.1} parent=1 // pred_check
      %p49 = pneg %p48
    $region31: #{positionwise_ffn.1} parent=1 // pred_check_branch
      %51 = sbr.rel (%p49) target = $region33
    $region32: #{positionwise_ffn.1} parent=1 // pred_region
      %52 = vst [vmem:[#allocation2] sm:$0xff] 0.0
      %53 = vst [vmem:[#allocation2 + $0x8] sm:$0xff] 0.0
      %54 = vst [vmem:[#allocation2 + $0x10] sm:$0xff] 0.0
      %55 = vst [vmem:[#allocation2 + $0x18] sm:$0xff] 0.0
    $region33: #{positionwise_ffn.1} parent=1 // pred_fallthru
      _
    %v56 = vld [vmem:[%s0] sm:$0xff]
    %v57 = vld [vmem:[%s0 + $0x8] sm:$0xff]
    %v58 = vld [vmem:[%s0 + $0x10] sm:$0xff]
    %v59 = vld [vmem:[%s0 + $0x18] sm:$0xff]
    %v60 = vpack.c.bf16 %v58, %v56
    %v61 = vpack.c.bf16 %v59, %v57
    %v62 = vld [vmem:[#allocation3] sm:$0xff]
    %v63 = vld [vmem:[#allocation3 + $0x8] sm:$0xff]
    %v64 = vld [vmem:[#allocation3 + $0x10] sm:$0xff]
    %v65 = vld [vmem:[#allocation3 + $0x18] sm:$0xff]
    %v66 = vld [vmem:[#allocation3 + $0x20] sm:$0xff]
    %v67 = vld [vmem:[#allocation3 + $0x28] sm:$0xff]
    %v68 = vld [vmem:[#allocation3 + $0x30] sm:$0xff]
    %v69 = vld [vmem:[#allocation3 + $0x38] sm:$0xff]
    %v70 = vld [vmem:[#allocation3 + $0x40] sm:$0xff]
    %v71 = vld [vmem:[#allocation3 + $0x48] sm:$0xff]
    %v72 = vld [vmem:[#allocation3 + $0x50] sm:$0xff]
    %v73 = vld [vmem:[#allocation3 + $0x58] sm:$0xff]
    %v74 = vld [vmem:[#allocation3 + $0x60] sm:$0xff]
    %v75 = vld [vmem:[#allocation3 + $0x68] sm:$0xff]
    %v76 = vld [vmem:[#allocation3 + $0x70] sm:$0xff]
    %v77 = vld [vmem:[#allocation3 + $0x78] sm:$0xff]
    %v78 = vld [vmem:[#allocation3 + $0x80] sm:$0xff]
    %v79 = vld [vmem:[#allocation3 + $0x88] sm:$0xff]
    %v80 = vld [vmem:[#allocation3 + $0x90] sm:$0xff]
    %v81 = vld [vmem:[#allocation3 + $0x98] sm:$0xff]
    %v82 = vld [vmem:[#allocation3 + $0xa0] sm:$0xff]
    %v83 = vld [vmem:[#allocation3 + $0xa8] sm:$0xff]
    %v84 = vld [vmem:[#allocation3 + $0xb0] sm:$0xff]
    %v85 = vld [vmem:[#allocation3 + $0xb8] sm:$0xff]
    %v86 = vld [vmem:[#allocation3 + $0xc0] sm:$0xff]
    %v87 = vld [vmem:[#allocation3 + $0xc8] sm:$0xff]
    %v88 = vld [vmem:[#allocation3 + $0xd0] sm:$0xff]
    %v89 = vld [vmem:[#allocation3 + $0xd8] sm:$0xff]
    %v90 = vld [vmem:[#allocation3 + $0xe0] sm:$0xff]
    %v91 = vld [vmem:[#allocation3 + $0xe8] sm:$0xff]
    %v92 = vld [vmem:[#allocation3 + $0xf0] sm:$0xff]
    %v93 = vld [vmem:[#allocation3 + $0xf8] sm:$0xff]
    %v94 = vld [vmem:[%s2] sm:$0x3]
    %v96 = vlaneseq
    %v97 = vshrl.u32 %v96, 7
    %v98 = vsub.s32 0, %v97
    %v99 = vrot.slane %v94, %v98
    %v100 = vlaneseq
    %v101 = vshrl.u32 %v100, 7
    %v102 = vsub.s32 1, %v101
    %v103 = vrot.slane %v94, %v102
    %v138 = vunpack.c.l.b16 %v62
    %v139 = vunpack.c.h.b16 %v62
    %v140 = vunpack.c.l.b16 %v63
    %v141 = vunpack.c.h.b16 %v63
    %v142 = vunpack.c.l.b16 %v64
    %v143 = vunpack.c.h.b16 %v64
    %v144 = vunpack.c.l.b16 %v65
    %v145 = vunpack.c.h.b16 %v65
    %v146 = vunpack.c.l.b16 %v66
    %v147 = vunpack.c.h.b16 %v66
    %v148 = vunpack.c.l.b16 %v67
    %v149 = vunpack.c.h.b16 %v67
    %v150 = vunpack.c.l.b16 %v68
    %v151 = vunpack.c.h.b16 %v68
    %v152 = vunpack.c.l.b16 %v69
    %v153 = vunpack.c.h.b16 %v69
    %v154 = vunpack.c.l.b16 %v70
    %v155 = vunpack.c.h.b16 %v70
    %v156 = vunpack.c.l.b16 %v71
    %v157 = vunpack.c.h.b16 %v71
    %v158 = vunpack.c.l.b16 %v72
    %v159 = vunpack.c.h.b16 %v72
    %v160 = vunpack.c.l.b16 %v73
    %v161 = vunpack.c.h.b16 %v73
    %v162 = vunpack.c.l.b16 %v74
    %v163 = vunpack.c.h.b16 %v74
    %v164 = vunpack.c.l.b16 %v75
    %v165 = vunpack.c.h.b16 %v75
    %v166 = vunpack.c.l.b16 %v76
    %v167 = vunpack.c.h.b16 %v76
    %v168 = vunpack.c.l.b16 %v77
    %v169 = vunpack.c.h.b16 %v77
    %v170 = vunpack.c.l.b16 %v78
    %v171 = vunpack.c.h.b16 %v78
    %v172 = vunpack.c.l.b16 %v79
    %v173 = vunpack.c.h.b16 %v79
    %v174 = vunpack.c.l.b16 %v80
    %v175 = vunpack.c.h.b16 %v80
    %v176 = vunpack.c.l.b16 %v81
    %v177 = vunpack.c.h.b16 %v81
    %v178 = vunpack.c.l.b16 %v82
    %v179 = vunpack.c.h.b16 %v82
    %v180 = vunpack.c.l.b16 %v83
    %v181 = vunpack.c.h.b16 %v83
    %v182 = vunpack.c.l.b16 %v84
    %v183 = vunpack.c.h.b16 %v84
    %v184 = vunpack.c.l.b16 %v85
    %v185 = vunpack.c.h.b16 %v85
    %v186 = vunpack.c.l.b16 %v86
    %v187 = vunpack.c.h.b16 %v86
    %v188 = vunpack.c.l.b16 %v87
    %v189 = vunpack.c.h.b16 %v87
    %v190 = vunpack.c.l.b16 %v88
    %v191 = vunpack.c.h.b16 %v88
    %v192 = vunpack.c.l.b16 %v89
    %v193 = vunpack.c.h.b16 %v89
    %v194 = vunpack.c.l.b16 %v90
    %v195 = vunpack.c.h.b16 %v90
    %v196 = vunpack.c.l.b16 %v91
    %v197 = vunpack.c.h.b16 %v91
    %v198 = vunpack.c.l.b16 %v92
    %v199 = vunpack.c.h.b16 %v92
    %v200 = vunpack.c.l.b16 %v93
    %v201 = vunpack.c.h.b16 %v93
    %v202 = vpack.c.b16 %v140, %v138
    %v203 = vpack.c.b16 %v141, %v139
    %v204 = vpack.c.b16 %v144, %v142
    %v205 = vpack.c.b16 %v145, %v143
    %v206 = vpack.c.b16 %v148, %v146
    %v207 = vpack.c.b16 %v149, %v147
    %v208 = vpack.c.b16 %v152, %v150
    %v209 = vpack.c.b16 %v153, %v151
    %v210 = vpack.c.b16 %v156, %v154
    %v211 = vpack.c.b16 %v157, %v155
    %v212 = vpack.c.b16 %v160, %v158
    %v213 = vpack.c.b16 %v161, %v159
    %v214 = vpack.c.b16 %v164, %v162
    %v215 = vpack.c.b16 %v165, %v163
    %v216 = vpack.c.b16 %v168, %v166
    %v217 = vpack.c.b16 %v169, %v167
    %v218 = vpack.c.b16 %v172, %v170
    %v219 = vpack.c.b16 %v173, %v171
    %v220 = vpack.c.b16 %v176, %v174
    %v221 = vpack.c.b16 %v177, %v175
    %v222 = vpack.c.b16 %v180, %v178
    %v223 = vpack.c.b16 %v181, %v179
    %v224 = vpack.c.b16 %v184, %v182
    %v225 = vpack.c.b16 %v185, %v183
    %v226 = vpack.c.b16 %v188, %v186
    %v227 = vpack.c.b16 %v189, %v187
    %v228 = vpack.c.b16 %v192, %v190
    %v229 = vpack.c.b16 %v193, %v191
    %v230 = vpack.c.b16 %v196, %v194
    %v231 = vpack.c.b16 %v197, %v195
    %v232 = vpack.c.b16 %v200, %v198
    %v233 = vpack.c.b16 %v201, %v199
    %266 = vmatprep.subr.bf16.mxu0 %v203
    %267 = vmatpush1.bf16.msra.mxu0 %v202
    %268 = vmatprep.subr.bf16.mxu0 %v205
    %269 = vmatpush1.bf16.msra.mxu0 %v204
    %270 = vmatprep.subr.bf16.mxu0 %v207
    %271 = vmatpush1.bf16.msra.mxu0 %v206
    %272 = vmatprep.subr.bf16.mxu0 %v209
    %273 = vmatpush1.bf16.msra.mxu0 %v208
    %274 = vmatprep.subr.bf16.mxu0 %v211
    %275 = vmatpush1.bf16.msra.mxu0 %v210
    %276 = vmatprep.subr.bf16.mxu0 %v213
    %277 = vmatpush1.bf16.msra.mxu0 %v212
    %278 = vmatprep.subr.bf16.mxu0 %v215
    %279 = vmatpush1.bf16.msra.mxu0 %v214
    %280 = vmatprep.subr.bf16.mxu0 %v217
    %281 = vmatpush1.bf16.msra.mxu0 %v216
    %282 = vmatprep.subr.bf16.mxu0 %v219
    %283 = vmatpush1.bf16.msra.mxu0 %v218
    %284 = vmatprep.subr.bf16.mxu0 %v221
    %285 = vmatpush1.bf16.msra.mxu0 %v220
    %286 = vmatprep.subr.bf16.mxu0 %v223
    %287 = vmatpush1.bf16.msra.mxu0 %v222
    %288 = vmatprep.subr.bf16.mxu0 %v225
    %289 = vmatpush1.bf16.msra.mxu0 %v224
    %290 = vmatprep.subr.bf16.mxu0 %v227
    %291 = vmatpush1.bf16.msra.mxu0 %v226
    %292 = vmatprep.subr.bf16.mxu0 %v229
    %293 = vmatpush1.bf16.msra.mxu0 %v228
    %294 = vmatprep.subr.bf16.mxu0 %v231
    %295 = vmatpush1.bf16.msra.mxu0 %v230
    %296 = vmatprep.subr.bf16.mxu0 %v233
    %297 = vmatpush1.bf16.msra.mxu0 %v232
    %298 = vmatprep.mubr.bf16.mxu0 %v61
    %299 = vmatmul.mubr.bf16.gmra.mrb[0].mxu0 %v60
    %v300 = vpop.f32.mrb[0].mxu0
    %v301 = vadd.f32 %v99, %v300
    %v302 = vpop.f32.mrb[0].mxu0
    %v303 = vadd.f32 %v103, %v302
    %v304 = vpop.f32.mrb[0].mxu0
    %v305 = vadd.f32 %v99, %v304
    %v306 = vpop.f32.mrb[0].mxu0
    %v307 = vadd.f32 %v103, %v306
    %308 = vdwg.mxu0
    %v309 = vmax.f32 %v301, 0.0
    %v310 = vmax.f32 %v303, 0.0
    %v311 = vmax.f32 %v305, 0.0
    %v312 = vmax.f32 %v307, 0.0
    %v313 = vld [vmem:[#allocation2] sm:$0xff]
    %v314 = vld [vmem:[#allocation2 + $0x8] sm:$0xff]
    %v315 = vld [vmem:[#allocation2 + $0x10] sm:$0xff]
    %v316 = vld [vmem:[#allocation2 + $0x18] sm:$0xff]
    %v317 = vpack.c.bf16 %v311, %v309
    %v318 = vpack.c.bf16 %v312, %v310
    %v319 = vld [vmem:[#allocation5] sm:$0xff]
    %v320 = vld [vmem:[#allocation5 + $0x8] sm:$0xff]
    %v321 = vld [vmem:[#allocation5 + $0x10] sm:$0xff]
    %v322 = vld [vmem:[#allocation5 + $0x18] sm:$0xff]
    %v323 = vld [vmem:[#allocation5 + $0x20] sm:$0xff]
    %v324 = vld [vmem:[#allocation5 + $0x28] sm:$0xff]
    %v325 = vld [vmem:[#allocation5 + $0x30] sm:$0xff]
    %v326 = vld [vmem:[#allocation5 + $0x38] sm:$0xff]
    %v327 = vld [vmem:[#allocation5 + $0x40] sm:$0xff]
    %v328 = vld [vmem:[#allocation5 + $0x48] sm:$0xff]
    %v329 = vld [vmem:[#allocation5 + $0x50] sm:$0xff]
    %v330 = vld [vmem:[#allocation5 + $0x58] sm:$0xff]
    %v331 = vld [vmem:[#allocation5 + $0x60] sm:$0xff]
    %v332 = vld [vmem:[#allocation5 + $0x68] sm:$0xff]
    %v333 = vld [vmem:[#allocation5 + $0x70] sm:$0xff]
    %v334 = vld [vmem:[#allocation5 + $0x78] sm:$0xff]
    %v335 = vld [vmem:[#allocation5 + $0x80] sm:$0xff]
    %v336 = vld [vmem:[#allocation5 + $0x88] sm:$0xff]
    %v337 = vld [vmem:[#allocation5 + $0x90] sm:$0xff]
    %v338 = vld [vmem:[#allocation5 + $0x98] sm:$0xff]
    %v339 = vld [vmem:[#allocation5 + $0xa0] sm:$0xff]
    %v340 = vld [vmem:[#allocation5 + $0xa8] sm:$0xff]
    %v341 = vld [vmem:[#allocation5 + $0xb0] sm:$0xff]
    %v342 = vld [vmem:[#allocation5 + $0xb8] sm:$0xff]
    %v343 = vld [vmem:[#allocation5 + $0xc0] sm:$0xff]
    %v344 = vld [vmem:[#allocation5 + $0xc8] sm:$0xff]
    %v345 = vld [vmem:[#allocation5 + $0xd0] sm:$0xff]
    %v346 = vld [vmem:[#allocation5 + $0xd8] sm:$0xff]
    %v347 = vld [vmem:[#allocation5 + $0xe0] sm:$0xff]
    %v348 = vld [vmem:[#allocation5 + $0xe8] sm:$0xff]
    %v349 = vld [vmem:[#allocation5 + $0xf0] sm:$0xff]
    %v350 = vld [vmem:[#allocation5 + $0xf8] sm:$0xff]
    %v383 = vunpack.c.l.b16 %v319
    %v384 = vunpack.c.h.b16 %v319
    %v385 = vunpack.c.l.b16 %v320
    %v386 = vunpack.c.h.b16 %v320
    %v387 = vunpack.c.l.b16 %v321
    %v388 = vunpack.c.h.b16 %v321
    %v389 = vunpack.c.l.b16 %v322
    %v390 = vunpack.c.h.b16 %v322
    %v391 = vunpack.c.l.b16 %v323
    %v392 = vunpack.c.h.b16 %v323
    %v393 = vunpack.c.l.b16 %v324
    %v394 = vunpack.c.h.b16 %v324
    %v395 = vunpack.c.l.b16 %v325
    %v396 = vunpack.c.h.b16 %v325
    %v397 = vunpack.c.l.b16 %v326
    %v398 = vunpack.c.h.b16 %v326
    %v399 = vunpack.c.l.b16 %v327
    %v400 = vunpack.c.h.b16 %v327
    %v401 = vunpack.c.l.b16 %v328
    %v402 = vunpack.c.h.b16 %v328
    %v403 = vunpack.c.l.b16 %v329
    %v404 = vunpack.c.h.b16 %v329
    %v405 = vunpack.c.l.b16 %v330
    %v406 = vunpack.c.h.b16 %v330
    %v407 = vunpack.c.l.b16 %v331
    %v408 = vunpack.c.h.b16 %v331
    %v409 = vunpack.c.l.b16 %v332
    %v410 = vunpack.c.h.b16 %v332
    %v411 = vunpack.c.l.b16 %v333
    %v412 = vunpack.c.h.b16 %v333
    %v413 = vunpack.c.l.b16 %v334
    %v414 = vunpack.c.h.b16 %v334
    %v415 = vunpack.c.l.b16 %v335
    %v416 = vunpack.c.h.b16 %v335
    %v417 = vunpack.c.l.b16 %v336
    %v418 = vunpack.c.h.b16 %v336
    %v419 = vunpack.c.l.b16 %v337
    %v420 = vunpack.c.h.b16 %v337
    %v421 = vunpack.c.l.b16 %v338
    %v422 = vunpack.c.h.b16 %v338
    %v423 = vunpack.c.l.b16 %v339
    %v424 = vunpack.c.h.b16 %v339
    %v425 = vunpack.c.l.b16 %v340
    %v426 = vunpack.c.h.b16 %v340
    %v427 = vunpack.c.l.b16 %v341
    %v428 = vunpack.c.h.b16 %v341
    %v429 = vunpack.c.l.b16 %v342
    %v430 = vunpack.c.h.b16 %v342
    %v431 = vunpack.c.l.b16 %v343
    %v432 = vunpack.c.h.b16 %v343
    %v433 = vunpack.c.l.b16 %v344
    %v434 = vunpack.c.h.b16 %v344
    %v435 = vunpack.c.l.b16 %v345
    %v436 = vunpack.c.h.b16 %v345
    %v437 = vunpack.c.l.b16 %v346
    %v438 = vunpack.c.h.b16 %v346
    %v439 = vunpack.c.l.b16 %v347
    %v440 = vunpack.c.h.b16 %v347
    %v441 = vunpack.c.l.b16 %v348
    %v442 = vunpack.c.h.b16 %v348
    %v443 = vunpack.c.l.b16 %v349
    %v444 = vunpack.c.h.b16 %v349
    %v445 = vunpack.c.l.b16 %v350
    %v446 = vunpack.c.h.b16 %v350
    %v447 = vpack.c.b16 %v385, %v383
    %v448 = vpack.c.b16 %v386, %v384
    %v449 = vpack.c.b16 %v389, %v387
    %v450 = vpack.c.b16 %v390, %v388
    %v451 = vpack.c.b16 %v393, %v391
    %v452 = vpack.c.b16 %v394, %v392
    %v453 = vpack.c.b16 %v397, %v395
    %v454 = vpack.c.b16 %v398, %v396
    %v455 = vpack.c.b16 %v401, %v399
    %v456 = vpack.c.b16 %v402, %v400
    %v457 = vpack.c.b16 %v405, %v403
    %v458 = vpack.c.b16 %v406, %v404
    %v459 = vpack.c.b16 %v409, %v407
    %v460 = vpack.c.b16 %v410, %v408
    %v461 = vpack.c.b16 %v413, %v411
    %v462 = vpack.c.b16 %v414, %v412
    %v463 = vpack.c.b16 %v417, %v415
    %v464 = vpack.c.b16 %v418, %v416
    %v465 = vpack.c.b16 %v421, %v419
    %v466 = vpack.c.b16 %v422, %v420
    %v467 = vpack.c.b16 %v425, %v423
    %v468 = vpack.c.b16 %v426, %v424
    %v469 = vpack.c.b16 %v429, %v427
    %v470 = vpack.c.b16 %v430, %v428
    %v471 = vpack.c.b16 %v433, %v431
    %v472 = vpack.c.b16 %v434, %v432
    %v473 = vpack.c.b16 %v437, %v435
    %v474 = vpack.c.b16 %v438, %v436
    %v475 = vpack.c.b16 %v441, %v439
    %v476 = vpack.c.b16 %v442, %v440
    %v477 = vpack.c.b16 %v445, %v443
    %v478 = vpack.c.b16 %v446, %v444
    %511 = vmatprep.subr.bf16.mxu0 %v448
    %512 = vmatpush1.bf16.msra.mxu0 %v447
    %513 = vmatprep.subr.bf16.mxu0 %v450
    %514 = vmatpush1.bf16.msra.mxu0 %v449
    %515 = vmatprep.subr.bf16.mxu0 %v452
    %516 = vmatpush1.bf16.msra.mxu0 %v451
    %517 = vmatprep.subr.bf16.mxu0 %v454
    %518 = vmatpush1.bf16.msra.mxu0 %v453
    %519 = vmatprep.subr.bf16.mxu0 %v456
    %520 = vmatpush1.bf16.msra.mxu0 %v455
    %521 = vmatprep.subr.bf16.mxu0 %v458
    %522 = vmatpush1.bf16.msra.mxu0 %v457
    %523 = vmatprep.subr.bf16.mxu0 %v460
    %524 = vmatpush1.bf16.msra.mxu0 %v459
    %525 = vmatprep.subr.bf16.mxu0 %v462
    %526 = vmatpush1.bf16.msra.mxu0 %v461
    %527 = vmatprep.subr.bf16.mxu0 %v464
    %528 = vmatpush1.bf16.msra.mxu0 %v463
    %529 = vmatprep.subr.bf16.mxu0 %v466
    %530 = vmatpush1.bf16.msra.mxu0 %v465
    %531 = vmatprep.subr.bf16.mxu0 %v468
    %532 = vmatpush1.bf16.msra.mxu0 %v467
    %533 = vmatprep.subr.bf16.mxu0 %v470
    %534 = vmatpush1.bf16.msra.mxu0 %v469
    %535 = vmatprep.subr.bf16.mxu0 %v472
    %536 = vmatpush1.bf16.msra.mxu0 %v471
    %537 = vmatprep.subr.bf16.mxu0 %v474
    %538 = vmatpush1.bf16.msra.mxu0 %v473
    %539 = vmatprep.subr.bf16.mxu0 %v476
    %540 = vmatpush1.bf16.msra.mxu0 %v475
    %541 = vmatprep.subr.bf16.mxu0 %v478
    %542 = vmatpush1.bf16.msra.mxu0 %v477
    %543 = vmatprep.mubr.bf16.mxu0 %v318
    %544 = vmatmul.mubr.bf16.gmra.mrb[0].mxu0 %v317
    %v545 = vpop.f32.mrb[0].mxu0
    %v546 = vadd.f32 0.0, %v545
    %v547 = vpop.f32.mrb[0].mxu0
    %v548 = vadd.f32 0.0, %v547
    %v549 = vpop.f32.mrb[0].mxu0
    %v550 = vadd.f32 0.0, %v549
    %v551 = vpop.f32.mrb[0].mxu0
    %v552 = vadd.f32 0.0, %v551
    %553 = vdwg.mxu0
    %v554 = vadd.f32 %v313, %v546
    %v555 = vadd.f32 %v314, %v548
    %v556 = vadd.f32 %v315, %v550
    %v557 = vadd.f32 %v316, %v552
    %558 = vst [vmem:[#allocation2] sm:$0xff] %v554
    %559 = vst [vmem:[#allocation2 + $0x8] sm:$0xff] %v555
    %560 = vst [vmem:[#allocation2 + $0x10] sm:$0xff] %v556
    %561 = vst [vmem:[#allocation2 + $0x18] sm:$0xff] %v557
    // Predicated region
    $region34: #{positionwise_ffn.1} parent=1 // pred_check
      %p562 = pneg %p48
    $region35: #{positionwise_ffn.1} parent=1 // pred_check_branch
      %564 = sbr.rel (%p562) target = $region37
    $region36: #{positionwise_ffn.1} parent=1 // pred_region
      %v565 = vld [vmem:[#allocation2] sm:$0xff]
      %v566 = vld [vmem:[#allocation2 + $0x8] sm:$0xff]
      %v567 = vld [vmem:[#allocation2 + $0x10] sm:$0xff]
      %v568 = vld [vmem:[#allocation2 + $0x18] sm:$0xff]
      %v569 = vld [vmem:[%s4] sm:$0x3]
      %v571 = vlaneseq
      %v572 = vshrl.u32 %v571, 7
      %v573 = vsub.s32 0, %v572
      %v574 = vrot.slane %v569, %v573
      %v575 = vlaneseq
      %v576 = vshrl.u32 %v575, 7
      %v577 = vsub.s32 1, %v576
      %v578 = vrot.slane %v569, %v577
      %v581 = vadd.f32 %v565, %v574
      %v582 = vadd.f32 %v566, %v578
      %v583 = vadd.f32 %v567, %v574
      %v584 = vadd.f32 %v568, %v578
      %585 = vst [vmem:[%s5] sm:$0xff] %v581
      %586 = vst [vmem:[%s5 + $0x8] sm:$0xff] %v582
      %587 = vst [vmem:[%s5 + $0x10] sm:$0xff] %v583
      %588 = vst [vmem:[%s5 + $0x18] sm:$0xff] %v584
    $region37: #{positionwise_ffn.1} parent=1 // pred_fallthru
      _
    // Predicated region
    $region38: #{positionwise_ffn.1} parent=1 // pred_check
      _
    $region39: #{positionwise_ffn.1} parent=1 // pred_check_branch
      %590 = sbr.rel (0) target = $region41
    $region40: #{positionwise_ffn.1} parent=1 // pred_region
      _
    $region41: #{positionwise_ffn.1} parent=1 // pred_fallthru
      _
    // Predicated region
    $region42: #{positionwise_ffn.1} parent=1 // pred_check
      _
    $region43: #{positionwise_ffn.1} parent=1 // pred_check_branch
      %592 = sbr.rel (0) target = $region45
    $region44: #{positionwise_ffn.1} parent=1 // pred_region
      _
    $region45: #{positionwise_ffn.1} parent=1 // pred_fallthru
      _
    %593 = vsyncpa [#allocation4], 1
    %594 = vsyncpa [#allocation6], 1

</llo_original>
